<compile_context>
chip_gen: v6e
topology: v6e:2x2x1
jax: 0.10.0
libtpu: 0.0.40
codegen_flags: <defaults>
</compile_context>

<pallas_src>
import functools

import jax
import jax.numpy as jnp
from jax.experimental import pallas as pl
from jax.experimental.pallas import tpu as pltpu


def _soft_xent_kernel(pred_ref, tgt_ref, out_ref, *, n_rows, tile_n, mask_rows):
    """One row-tile: out_ref[0, 0, :] = sum over rows of -target * log_softmax(pred)."""
    p = pred_ref[...].astype(jnp.float32)
    t = tgt_ref[...].astype(jnp.float32)

    if mask_rows:
        # The last grid step may read past the end of the inputs; those rows hold
        # garbage (possibly NaN/Inf), so replace them with safe values BEFORE any
        # exp/multiply — multiplying garbage by a 0 mask is not sufficient.
        row = pl.program_id(0) * tile_n + jax.lax.broadcasted_iota(
            jnp.int32, (tile_n, 1), 0)
        valid = row < n_rows
        p = jnp.where(valid, p, 0.0)
        t = jnp.where(valid, t, 0.0)

    # Numerically stable log-softmax along the class (lane) axis.
    m = jnp.max(p, axis=1, keepdims=True)                        # (tile_n, 1)
    s = p - m                                                    # (tile_n, C)
    lse = jnp.log(jnp.sum(jnp.exp(s), axis=1, keepdims=True))    # (tile_n, 1)

    # -target * log_softmax(pred) == target * (lse - s)
    loss = t * (lse - s)                                         # (tile_n, C)

    # Reduce only over the row (sublane) axis; lanes stay dense.  The single
    # cross-lane reduction over C happens once, outside the pallas_call.
    out_ref[...] = jnp.sum(loss, axis=0, keepdims=True)[None]    # (1, 1, C)


def _round_down(x, m):
    return (x // m) * m


def _tpu_vmem_capacity_bytes():
    """Physical VMEM per TensorCore (64 MiB on v7x, 128 MiB on v5e/v6e)."""
    try:
        info = pltpu.get_tpu_info()
        cap = getattr(info, "vmem_capacity_bytes", None)
        if cap:
            return int(cap)
    except Exception:
        pass
    return 128 * 1024 * 1024


def soft_cross_entropy(pred, target, reduction="mean"):
    """Pallas TPU implementation of SoftCrossEntropy.forward.

    loss = sum(-target * log_softmax(pred, dim=1))   -> scalar
    The reference module applies torch.mean / torch.sum to an already-scalar
    loss, so both reductions are the identity here.
    """
    N, C = pred.shape
    assert target.shape == (N, C)

    p_isz = jnp.dtype(pred.dtype).itemsize
    t_isz = jnp.dtype(target.dtype).itemsize

    # Sublane packing multiple: 8 rows for 32-bit, 16 for bf16, 32 for int8/fp8.
    sub_m = max(8, 32 // min(p_isz, t_isz))

    # --- Per-chip VMEM budget (v7x has only 64 MiB/TC) -----------------------
    vmem_phys = _tpu_vmem_capacity_bytes()
    # Blocks + in-kernel f32 temporaries get ~60% of physical VMEM (<= 40 MiB);
    # the compiler limit gets ~75% (<= 96 MiB) so nothing silently spills.
    block_budget = min(40 * 1024 * 1024, (vmem_phys * 3) // 5)
    vmem_limit = max(32 * 1024 * 1024, min((vmem_phys * 3) // 4, 96 * 1024 * 1024))

    # Per-row VMEM cost: both inputs double-buffered + ~4 live f32 temporaries
    # (p, s, exp(s), loss) that the previous tile formula ignored.
    row_cost = 2 * C * (p_isz + t_isz) + 4 * C * 4
    tile_cap = max(sub_m, _round_down(block_budget // row_cost, sub_m))
    tile_cap = min(tile_cap, 8192)
    # TODO(synk): for vocab-scale C where even tile_cap == sub_m blows VMEM, add a
    # second "arbitrary" grid axis over C with an online max/logsumexp carry.
    # TODO(synk): for awkward C (C % 128 != 0) on compute-exposed configs, pad the
    # class axis to a multiple of 128 (pred with -1e30, target with 0) for
    # lane-dense loads/stores; skipped here since this kernel stays HBM-bound.

    # --- Ragged N: no full-array pad. Only if N is smaller than one sublane
    # group do we pad a few zero rows (zero target => exactly 0 loss); otherwise
    # the last partial block is masked inside the kernel. ---------------------
    if N < sub_m:
        pad = sub_m - N
        pred = jnp.pad(pred, ((0, pad), (0, 0)))
        target = jnp.pad(target, ((0, pad), (0, 0)))
    n_work = pred.shape[0]

    tile_n = min(tile_cap, _round_down(n_work, sub_m))
    num_tiles = -(-n_work // tile_n)
    mask_rows = (n_work % tile_n) != 0

    # v7x (64 MiB VMEM, 2 TensorCores): actually shard the row-tile loop across
    # both cores; plain "parallel" is near-neutral there.  v5e/v6e (single TC,
    # 128 MiB VMEM) keep "parallel".
    if vmem_phys <= 96 * 1024 * 1024 and num_tiles > 1:
        dim_sem = (pltpu.CORE_PARALLEL,)
    else:
        dim_sem = ("parallel",)

    kernel = functools.partial(
        _soft_xent_kernel, n_rows=n_work, tile_n=tile_n, mask_rows=mask_rows)

    out_bytes = num_tiles * C * 4
    partials = pl.pallas_call(
        kernel,
        out_shape=jax.ShapeDtypeStruct((num_tiles, 1, C), jnp.float32),
        grid_spec=pltpu.PrefetchScalarGridSpec(
            num_scalar_prefetch=0,
            grid=(num_tiles,),
            in_specs=[
                pl.BlockSpec((tile_n, C), lambda i: (i, 0)),
                pl.BlockSpec((tile_n, C), lambda i: (i, 0)),
            ],
            out_specs=pl.BlockSpec((1, 1, C), lambda i: (i, 0, 0)),
        ),
        compiler_params=pltpu.CompilerParams(
            # Each grid step owns its own output block -> no carried accumulator.
            dimension_semantics=dim_sem,
            vmem_limit_bytes=vmem_limit,
        ),
        cost_estimate=pl.CostEstimate(
            flops=5 * n_work * C,
            transcendentals=n_work * C + n_work,
            bytes_accessed=n_work * C * (p_isz + t_isz) + out_bytes,
        ),
    )(pred, target)

    loss = jnp.sum(partials)
    # The reference module applies torch.mean / torch.sum to a scalar: identity.
    # TODO(synk): if a per-batch mean (loss / N) is ever wanted, divide by N here.
    if reduction in ("mean", "sum"):
        return loss
    return loss


def _reference(pred, target):
    lsm = jax.nn.log_softmax(pred.astype(jnp.float32), axis=1)
    return jnp.sum(-target.astype(jnp.float32) * lsm)


if __name__ == "__main__":
    key = jax.random.PRNGKey(0)
    k1, k2, k3, k4, k5, k6 = jax.random.split(key, 6)

    # Case 1: aligned shapes (batch=16, classes=128) -> single full tile, no mask.
    pred1 = jax.random.normal(k1, (16, 128), dtype=jnp.float32)
    tgt1 = jax.nn.softmax(jax.random.normal(k2, (16, 128), dtype=jnp.float32), axis=1)
    loss1 = jax.block_until_ready(soft_cross_entropy(pred1, tgt1, reduction="mean"))
    ref1 = _reference(pred1, tgt1)
    assert jnp.allclose(loss1, ref1, rtol=1e-5, atol=1e-5), (loss1, ref1)

    # Case 2: ragged batch + non-128 class count -> in-kernel row-masking path.
    pred2 = jax.random.normal(k3, (13, 96), dtype=jnp.float32)
    tgt2 = jax.nn.softmax(jax.random.normal(k4, (13, 96), dtype=jnp.float32), axis=1)
    loss2 = jax.block_until_ready(soft_cross_entropy(pred2, tgt2, reduction="sum"))
    ref2 = _reference(pred2, tgt2)
    assert jnp.allclose(loss2, ref2, rtol=1e-5, atol=1e-5), (loss2, ref2)

    # Case 3: bf16 inputs, ragged batch -> 16-row sublane multiple + masking.
    pred3 = jax.random.normal(k5, (40, 128), dtype=jnp.float32).astype(jnp.bfloat16)
    tgt3 = jax.nn.softmax(
        jax.random.normal(k6, (40, 128), dtype=jnp.float32), axis=1
    ).astype(jnp.bfloat16)
    loss3 = jax.block_until_ready(soft_cross_entropy(pred3, tgt3, reduction="mean"))
    ref3 = _reference(pred3, tgt3)
    assert jnp.allclose(loss3, ref3, rtol=1e-4, atol=1e-3), (loss3, ref3)

    print("KERNEL_OK")
</pallas_src>

<mosaic_0001>
module attributes {stable_mosaic.version = 11 : i64} {
  func.func @_soft_xent_kernel(%arg0: i32, %arg1: memref<16x128xf32, #tpu.memory_space<vmem>>, %arg2: memref<16x128xf32, #tpu.memory_space<vmem>>, %arg3: memref<1x1x128xf32, #tpu.memory_space<vmem>>) attributes {dimension_semantics = [#tpu.dimension_semantics<parallel>], iteration_bounds = array<i64: 1>, scalar_prefetch = 0 : i64, scratch_operands = 0 : i64, tpu.core_type = #tpu.core_type<tc>, window_params = [{transform_indices = @transform_0, window_bounds = array<i64: 16, 128>}, {transform_indices = @transform_1, window_bounds = array<i64: 16, 128>}, {transform_indices = @transform_2, window_bounds = array<i64: 1, 1, 128>}]} {
    %c0 = arith.constant 0 : index
    %c0_0 = arith.constant 0 : index
    %0 = vector.load %arg1[%c0, %c0_0] : memref<16x128xf32, #tpu.memory_space<vmem>>, vector<16x128xf32>
    %c0_1 = arith.constant 0 : index
    %c0_2 = arith.constant 0 : index
    %1 = vector.load %arg2[%c0_1, %c0_2] : memref<16x128xf32, #tpu.memory_space<vmem>>, vector<16x128xf32>
    %cst = arith.constant dense<0xFF800000> : vector<16xf32>
    %2 = vector.multi_reduction <maximumf>, %0, %cst [1] : vector<16x128xf32> to vector<16xf32>
    %3 = vector.shape_cast %2 : vector<16xf32> to vector<16x1xf32>
    %4 = vector.broadcast %3 : vector<16x1xf32> to vector<16x128xf32>
    %5 = arith.subf %0, %4 : vector<16x128xf32>
    %6 = math.exp %5 : vector<16x128xf32>
    %cst_3 = arith.constant dense<0.000000e+00> : vector<16xf32>
    %7 = vector.multi_reduction <add>, %6, %cst_3 [1] : vector<16x128xf32> to vector<16xf32>
    %8 = vector.shape_cast %7 : vector<16xf32> to vector<16x1xf32>
    %9 = math.log %8 : vector<16x1xf32>
    %10 = vector.broadcast %9 : vector<16x1xf32> to vector<16x128xf32>
    %11 = arith.subf %10, %5 : vector<16x128xf32>
    %12 = arith.mulf %1, %11 : vector<16x128xf32>
    %cst_4 = arith.constant dense<0.000000e+00> : vector<128xf32>
    %13 = vector.multi_reduction <add>, %12, %cst_4 [0] : vector<16x128xf32> to vector<128xf32>
    %14 = vector.shape_cast %13 : vector<128xf32> to vector<1x128xf32>
    %15 = vector.shape_cast %14 : vector<1x128xf32> to vector<1x1x128xf32>
    %c0_5 = arith.constant 0 : index
    %c0_6 = arith.constant 0 : index
    %c0_7 = arith.constant 0 : index
    %16 = vector.load %arg3[%c0_5, %c0_6, %c0_7] : memref<1x1x128xf32, #tpu.memory_space<vmem>>, vector<1x1x128xf32>
    tpu.vector_store %arg3[%c0_5, %c0_6, %c0_7], %15 {strides = array<i32>} : memref<1x1x128xf32, #tpu.memory_space<vmem>>, vector<1x1x128xf32>,
    return
  }
  func.func @transform_0(%arg0: i32) -> (i32, i32) {
    %c0_i32 = arith.constant 0 : i32
    %c0_i32_0 = arith.constant 0 : i32
    return %arg0, %c0_i32 : i32, i32
  }
  func.func @transform_1(%arg0: i32) -> (i32, i32) {
    %c0_i32 = arith.constant 0 : i32
    %c0_i32_0 = arith.constant 0 : i32
    return %arg0, %c0_i32 : i32, i32
  }
  func.func @transform_2(%arg0: i32) -> (i32, i32, i32) {
    %c0_i32 = arith.constant 0 : i32
    %c0_i32_0 = arith.constant 0 : i32
    %c0_i32_1 = arith.constant 0 : i32
    return %arg0, %c0_i32, %c0_i32_0 : i32, i32, i32
  }
}

</mosaic_0001>

<llo_original>
// kernel: tpu_custom_call.1
$region0: #{tpu_custom_call.1}
  #allocation0 [shape = 'u32[]', space=smem, size = 0x4, offset = 0x4, fixed_abs, tag = 'smem constant byte address 0x4 - core index']
  #allocation1 [shape = 'u32[144,128]{1,0:T(1,128)}', space=vmem, size = 0x12000, scoped, tag = 'internal scratch']
  %s0 = inlined_call_operand.hbm [shape: f32[16,128], index: 0, kind: input, shape index: {}]
  %s1 = inlined_call_operand.hbm [shape: f32[16,128], index: 1, kind: input, shape index: {}]
  %s2 = inlined_call_operand.hbm [shape: f32[1,1,128], index: 2, kind: output, shape index: {}]
  %s3 = sld [smem:[#allocation0]]
  $region26: #{tpu_custom_call.1} parent=0
    _
  %s5 = ssub.s32 1, %s3
  %s6 = scalar_select 0, %s5, %s3
  $region1: #{tpu_custom_call.1} parent=0
    #allocation2 [shape = 'u8[8192]{0}', space=vmem, size = 0x2000, scoped, tag = 'input window, operand 0, single buffered']
    #allocation3 [shape = 's32[1]{0}', space=sflag, size = 0x4, scoped, tag = 'scoped memory for tpu_custom_call.1']
    #allocation4 [shape = 's32[1]{0}', space=sflag, size = 0x4, scoped, tag = 'scoped memory for tpu_custom_call.1']
    #allocation5 [shape = 'u8[8192]{0}', space=vmem, size = 0x2000, scoped, tag = 'input window, operand 1, single buffered']
    #allocation6 [shape = 's32[1]{0}', space=sflag, size = 0x4, scoped, tag = 'scoped memory for tpu_custom_call.1']
    #allocation7 [shape = 'u8[512]{0}', space=vmem, size = 0x400, scoped, tag = 'output window, operand 0, single buffered']
    %7 = vsyncpa [#allocation3], 0
    %8 = vsyncpa [#allocation6], 0
    %9 = vsyncpa [#allocation4], 0
    // Predicated region
    $region2: #{tpu_custom_call.1} parent=1 // pred_check
      _
    $region3: #{tpu_custom_call.1} parent=1 // pred_check_branch
      %11 = sbr.rel (0) target = $region5
    $region4: #{tpu_custom_call.1} parent=1 // pred_region
      %s13 = ssub.s32 256, 256
      %14 = vsyncadd [#allocation3], %s13
      %s15 = sshll.u32 [#allocation2], 4
      %s16 = int_to_ptr.vmem [resolvable:$true] %s15
      %21 = dma.hbm_to_vmem [thread:$0]  %s0, 256, %s16, [#allocation3], 128, 128, 8
    $region5: #{tpu_custom_call.1} parent=1 // pred_fallthru
      _
    // Predicated region
    $region6: #{tpu_custom_call.1} parent=1 // pred_check
      _
    $region7: #{tpu_custom_call.1} parent=1 // pred_check_branch
      %23 = sbr.rel (0) target = $region9
    $region8: #{tpu_custom_call.1} parent=1 // pred_region
      %s25 = ssub.s32 256, 256
      %26 = vsyncadd [#allocation6], %s25
      %s27 = sshll.u32 [#allocation5], 4
      %s28 = int_to_ptr.vmem [resolvable:$true] %s27
      %33 = dma.hbm_to_vmem [thread:$0]  %s1, 256, %s28, [#allocation6], 128, 128, 8
    $region9: #{tpu_custom_call.1} parent=1 // pred_fallthru
      _
    // Predicated region
    $region10: #{tpu_custom_call.1} parent=1 // pred_check
      _
    $region11: #{tpu_custom_call.1} parent=1 // pred_check_branch
      %35 = sbr.rel (0) target = $region13
    $region12: #{tpu_custom_call.1} parent=1 // pred_region
      %36 = dma.done [#allocation3], 256
    $region13: #{tpu_custom_call.1} parent=1 // pred_fallthru
      _
    // Predicated region
    $region14: #{tpu_custom_call.1} parent=1 // pred_check
      _
    $region15: #{tpu_custom_call.1} parent=1 // pred_check_branch
      %38 = sbr.rel (0) target = $region17
    $region16: #{tpu_custom_call.1} parent=1 // pred_region
      %39 = dma.done [#allocation6], 256
    $region17: #{tpu_custom_call.1} parent=1 // pred_fallthru
      _
    %v40 = vld [vmem:[#allocation2] sm:$0xff]
    %v41 = vld [vmem:[#allocation2 + $0x8] sm:$0xff]
    %v42 = vld [vmem:[#allocation5] sm:$0xff]
    %v43 = vld [vmem:[#allocation5 + $0x8] sm:$0xff]
    %44 = vmax.xlane.f32.xlu0 %v40
    %v45 = vpop.xlane.xlu0 %44
    %46 = vmax.xlane.f32.xlu0 %v41
    %v47 = vpop.xlane.xlu0 %46
    %v48 = vsub.f32 %v40, %v45
    %v49 = vsub.f32 %v41, %v47
    %v50 = vmul.f32 %v48, 1.442695
    %v51 = vpow.pop %v50
    %v52 = vmul.f32 %v49, 1.442695
    %v53 = vpow.pop %v52
    %54 = vadd.xlane.f32.xlu0 %v51
    %v55 = vpop.xlane.xlu0 %54
    %56 = vadd.xlane.f32.xlu0 %v53
    %v57 = vpop.xlane.xlu0 %56
    %v58 = vlog2.pop %v55
    %v59 = vmul.f32 %v58, 0.6931472
    %v60 = vlog2.pop %v57
    %v61 = vmul.f32 %v60, 0.6931472
    %v62 = vsub.f32 %v59, %v48
    %v63 = vsub.f32 %v61, %v49
    %v64 = vmul.f32 %v42, %v62
    %v65 = vmul.f32 %v43, %v63
    %v66 = vadd.f32 %v64, %v65
    %v67 = vrot.slane %v66, 4
    %v68 = vadd.f32 %v66, %v67
    %v69 = vrot.slane %v68, 2
    %v70 = vadd.f32 %v68, %v69
    %v71 = vrot.slane %v70, 1
    %v72 = vadd.f32 %v70, %v71
    %73 = vst [vmem:[#allocation7] sm:$0x1] %v72
    // Predicated region
    $region18: #{tpu_custom_call.1} parent=1 // pred_check
      _
    $region19: #{tpu_custom_call.1} parent=1 // pred_check_branch
      %75 = sbr.rel (0) target = $region21
    $region20: #{tpu_custom_call.1} parent=1 // pred_region
      %s77 = ssub.s32 16, 16
      %78 = vsyncadd [#allocation4], %s77
      %s80 = sshll.u32 [#allocation7], 4
      %s81 = int_to_ptr.vmem [resolvable:$true] %s80
      %83 = dma.vmem_to_hbm [thread:$0]  %s81, 16, %s2, [#allocation4]
    $region21: #{tpu_custom_call.1} parent=1 // pred_fallthru
      _
    // Predicated region
    $region22: #{tpu_custom_call.1} parent=1 // pred_check
      _
    $region23: #{tpu_custom_call.1} parent=1 // pred_check_branch
      %85 = sbr.rel (0) target = $region25
    $region24: #{tpu_custom_call.1} parent=1 // pred_region
      %86 = dma.done [#allocation4], 16
    $region25: #{tpu_custom_call.1} parent=1 // pred_fallthru
      _
    %87 = vsyncpa [#allocation3], 1
    %88 = vsyncpa [#allocation6], 1
    %89 = vsyncpa [#allocation4], 1

</llo_original>
